<compile_context>
chip_gen: v7x
topology: tpu7x:2x2x1
jax: 0.10.0
libtpu: 0.0.40
codegen_flags: <defaults>
</compile_context>

<pallas_src>
import jax
import jax.numpy as jnp
from jax.experimental import pallas as pl
from jax.experimental.pallas import tpu as pltpu


def occflow_kernel(x_ref,                 # (Cin, tile)   fused [z ; Q]^T
                   win_ref, bin_ref,      # (h4, Cin), (h4, 1)  fused linear1+linear2
                   wr1_ref, br1_ref,      # (h4, h4),  (h4, 1)  reslayer.linear1
                   wr2_ref, br2_ref,      # (h4, h4),  (h4, 1)  reslayer.linear2
                   wout_ref, bout_ref,    # (3, h4),   (3, 1)   fused linear3+linear4
                   out_ref):              # (3, tile)           [O ; F]^T
    cdt = win_ref.dtype                   # MXU operand dtype (f32 or bf16)

    # Fused prologue: W1 z + b1 + W2 Q + b2  ==  W_in [z;Q] + (b1 + b2)
    of = jnp.dot(win_ref[...], x_ref[...],
                 preferred_element_type=jnp.float32) + bin_ref[...]

    h4, tile = of.shape

    # Hoist weight/bias reads and the bias lane-broadcasts out of the loop
    # (JAX does not CSE broadcast_in_dim).
    wr1 = wr1_ref[...]
    wr2 = wr2_ref[...]
    br1 = jnp.broadcast_to(br1_ref[...], (h4, tile))
    br2 = jnp.broadcast_to(br2_ref[...], (h4, tile))

    # 3 applications of the (shared-weight) residual layer:
    #   out = linear2(linear1(x) + x)
    for _ in range(3):
        h = jnp.dot(wr1, of.astype(cdt),
                    preferred_element_type=jnp.float32) + br1 + of
        of = jnp.dot(wr2, h.astype(cdt),
                     preferred_element_type=jnp.float32) + br2

    of = jnp.maximum(of, 0.0)             # ReLU in f32

    # Fused heads: row 0 -> O, rows 1:3 -> F.
    out = jnp.dot(wout_ref[...], of.astype(cdt),
                  preferred_element_type=jnp.float32) + bout_ref[...]
    out_ref[...] = out.astype(out_ref.dtype)


def occupancy_flow(Q, z, params, *, tile_rows=2048, use_bf16=False):
    """Q: (N, 3), z: (N, in_channel + h3) -> (O: (N, 1), F: (N, 2))."""
    N, three = Q.shape
    assert three == 3
    in_z = z.shape[1]
    h4 = params["w1"].shape[1]
    Cin = in_z + 3

    # ---- layout plumbing (wrapper side): fuse inputs, go feature-major ----
    Xt = jnp.concatenate([z, Q], axis=1).T            # (Cin, N)

    # tile size: multiple of 128, no larger than (padded) N, default 2048
    n128 = pl.cdiv(N, 128) * 128
    tile = max(128, (min(int(tile_rows), n128) // 128) * 128)
    n_pad = pl.cdiv(N, tile) * tile
    if n_pad != N:
        Xt = jnp.pad(Xt, ((0, 0), (0, n_pad - N)))    # pad rows with zeros

    # ---- weight prep: feature-major, prologue/epilogue fused ----
    w_in = jnp.concatenate([params["w1"], params["w2"]], axis=0).T   # (h4, Cin)
    b_in = (params["b1"] + params["b2"]).reshape(h4, 1)              # (h4, 1)
    wr1 = params["wr1"].T                                            # (h4, h4)
    br1 = params["br1"].reshape(h4, 1)
    wr2 = params["wr2"].T                                            # (h4, h4)
    br2 = params["br2"].reshape(h4, 1)
    w_out = jnp.concatenate([params["w3"], params["w4"]], axis=1).T  # (3, h4)
    b_out = jnp.concatenate([params["b3"], params["b4"]], axis=1).reshape(3, 1)

    if use_bf16:
        # MXU operands only; biases / elementwise math stay f32 (v5e-safe).
        Xt = Xt.astype(jnp.bfloat16)
        w_in = w_in.astype(jnp.bfloat16)
        wr1 = wr1.astype(jnp.bfloat16)
        wr2 = wr2.astype(jnp.bfloat16)
        w_out = w_out.astype(jnp.bfloat16)

    grid = (n_pad // tile,)

    def full_spec(shape):
        return pl.BlockSpec(shape, lambda i: (0, 0))

    weight_args = (w_in, b_in, wr1, br1, wr2, br2, w_out, b_out)
    weight_specs = [full_spec(w.shape) for w in weight_args]

    out = pl.pallas_call(
        occflow_kernel,
        out_shape=jax.ShapeDtypeStruct((3, n_pad), Q.dtype),
        grid_spec=pltpu.PrefetchScalarGridSpec(
            num_scalar_prefetch=0,
            grid=grid,
            in_specs=[pl.BlockSpec((Cin, tile), lambda i: (0, i))] + weight_specs,
            out_specs=pl.BlockSpec((3, tile), lambda i: (0, i)),
        ),
        compiler_params=pltpu.CompilerParams(
            dimension_semantics=("parallel",)),
    )(Xt, *weight_args)

    out = out[:, :N]                      # drop padded points
    O = out[0:1, :].T                     # (N, 1)
    F = out[1:3, :].T                     # (N, 2)
    return O, F


def init_params(key, in_channel, h3, h4, dtype=jnp.float32):
    """Deterministic synthetic init (PyTorch-like uniform(-1/sqrt(fan_in)))."""
    in_z = in_channel + h3

    def linear(key, fan_in, fan_out):
        kw, kb = jax.random.split(key)
        bound = 1.0 / jnp.sqrt(fan_in)
        # store weights already transposed: (fan_in, fan_out), so y = x @ W + b
        w = jax.random.uniform(kw, (fan_in, fan_out), dtype, -bound, bound)
        b = jax.random.uniform(kb, (1, fan_out), dtype, -bound, bound)
        return w, b

    keys = jax.random.split(key, 6)
    w1, b1 = linear(keys[0], in_z, h4)
    w2, b2 = linear(keys[1], 3, h4)
    wr1, br1 = linear(keys[2], h4, h4)
    wr2, br2 = linear(keys[3], h4, h4)
    w3, b3 = linear(keys[4], h4, 1)
    w4, b4 = linear(keys[5], h4, 2)
    return dict(w1=w1, b1=b1, w2=w2, b2=b2,
                wr1=wr1, br1=br1, wr2=wr2, br2=br2,
                w3=w3, b3=b3, w4=w4, b4=b4)


def occupancy_flow_ref(Q, z, p):
    """Pure-JAX reference mirroring the PyTorch forward."""
    zz = z @ p["w1"] + p["b1"]
    qq = Q @ p["w2"] + p["b2"]
    of = zz + qq
    for _ in range(3):
        of = (of @ p["wr1"] + p["br1"] + of) @ p["wr2"] + p["br2"]
    of = jnp.maximum(of, 0.0)
    return of @ p["w3"] + p["b3"], of @ p["w4"] + p["b4"]


if __name__ == "__main__":
    key = jax.random.PRNGKey(0)
    kp, kq, kz = jax.random.split(key, 3)

    in_channel, h3, h4 = 4, 12, 32     # small, consistent with the module
    N = 256                            # flattened batch of query points

    params = init_params(kp, in_channel, h3, h4)
    Q = jax.random.normal(kq, (N, 3), jnp.float32)
    z = jax.random.normal(kz, (N, in_channel + h3), jnp.float32)

    O_ref, F_ref = occupancy_flow_ref(Q, z, params)

    # f32 path, single big tile (default tile_rows clamps to padded N).
    O, F = jax.block_until_ready(occupancy_flow(Q, z, params))
    assert O.shape == (N, 1) and F.shape == (N, 2)
    assert jnp.allclose(O, O_ref, atol=1e-4, rtol=1e-4), "O mismatch (f32)"
    assert jnp.allclose(F, F_ref, atol=1e-4, rtol=1e-4), "F mismatch (f32)"

    # f32 path, multi-step grid (exercises tiling / megacore sharding).
    O2, F2 = jax.block_until_ready(occupancy_flow(Q, z, params, tile_rows=128))
    assert jnp.allclose(O2, O_ref, atol=1e-4, rtol=1e-4), "O mismatch (tiled)"
    assert jnp.allclose(F2, F_ref, atol=1e-4, rtol=1e-4), "F mismatch (tiled)"

    # bf16 MXU-operand path (f32 accumulation / elementwise), loose tolerance.
    O3, F3 = jax.block_until_ready(occupancy_flow(Q, z, params, use_bf16=True))
    assert jnp.allclose(O3, O_ref, atol=1.5e-1, rtol=1.5e-1), "O mismatch (bf16)"
    assert jnp.allclose(F3, F_ref, atol=1.5e-1, rtol=1.5e-1), "F mismatch (bf16)"

    print("KERNEL_OK")
</pallas_src>

<mosaic_0001>
module attributes {stable_mosaic.version = 11 : i64} {
  func.func @occflow_kernel(%arg0: i32, %arg1: memref<19x256xf32, #tpu.memory_space<vmem>>, %arg2: memref<32x19xf32, #tpu.memory_space<vmem>>, %arg3: memref<32x1xf32, #tpu.memory_space<vmem>>, %arg4: memref<32x32xf32, #tpu.memory_space<vmem>>, %arg5: memref<32x1xf32, #tpu.memory_space<vmem>>, %arg6: memref<32x32xf32, #tpu.memory_space<vmem>>, %arg7: memref<32x1xf32, #tpu.memory_space<vmem>>, %arg8: memref<3x32xf32, #tpu.memory_space<vmem>>, %arg9: memref<3x1xf32, #tpu.memory_space<vmem>>, %arg10: memref<3x256xf32, #tpu.memory_space<vmem>>) attributes {dimension_semantics = [#tpu.dimension_semantics<parallel>], iteration_bounds = array<i64: 1>, scalar_prefetch = 0 : i64, scratch_operands = 0 : i64, tpu.core_type = #tpu.core_type<tc>, window_params = [{transform_indices = @transform_0, window_bounds = array<i64: 19, 256>}, {pipeline_mode = #tpu.pipeline_mode<synchronous>, transform_indices = @transform_1, window_bounds = array<i64: 32, 19>}, {pipeline_mode = #tpu.pipeline_mode<synchronous>, transform_indices = @transform_2, window_bounds = array<i64: 32, 1>}, {pipeline_mode = #tpu.pipeline_mode<synchronous>, transform_indices = @transform_3, window_bounds = array<i64: 32, 32>}, {pipeline_mode = #tpu.pipeline_mode<synchronous>, transform_indices = @transform_4, window_bounds = array<i64: 32, 1>}, {pipeline_mode = #tpu.pipeline_mode<synchronous>, transform_indices = @transform_5, window_bounds = array<i64: 32, 32>}, {pipeline_mode = #tpu.pipeline_mode<synchronous>, transform_indices = @transform_6, window_bounds = array<i64: 32, 1>}, {pipeline_mode = #tpu.pipeline_mode<synchronous>, transform_indices = @transform_7, window_bounds = array<i64: 3, 32>}, {pipeline_mode = #tpu.pipeline_mode<synchronous>, transform_indices = @transform_8, window_bounds = array<i64: 3, 1>}, {transform_indices = @transform_9, window_bounds = array<i64: 3, 256>}]} {
    %c0 = arith.constant 0 : index
    %c0_0 = arith.constant 0 : index
    %0 = vector.load %arg2[%c0, %c0_0] : memref<32x19xf32, #tpu.memory_space<vmem>>, vector<32x19xf32>
    %c0_1 = arith.constant 0 : index
    %c0_2 = arith.constant 0 : index
    %1 = vector.load %arg1[%c0_1, %c0_2] : memref<19x256xf32, #tpu.memory_space<vmem>>, vector<19x256xf32>
    %cst = arith.constant dense<0.000000e+00> : vector<32x256xf32>
    %2 = tpu.matmul %0, %1, %cst {dimension_numbers = #tpu.dot_dimension_numbers<[1], [0], [0], [1], [0, 0, 1, 1], [], []>} : vector<32x19xf32>, vector<19x256xf32>, vector<32x256xf32> -> vector<32x256xf32>
    %c0_3 = arith.constant 0 : index
    %c0_4 = arith.constant 0 : index
    %3 = vector.load %arg3[%c0_3, %c0_4] : memref<32x1xf32, #tpu.memory_space<vmem>>, vector<32x1xf32>
    %4 = vector.broadcast %3 : vector<32x1xf32> to vector<32x256xf32>
    %5 = arith.addf %2, %4 : vector<32x256xf32>
    %c0_5 = arith.constant 0 : index
    %c0_6 = arith.constant 0 : index
    %6 = vector.load %arg4[%c0_5, %c0_6] : memref<32x32xf32, #tpu.memory_space<vmem>>, vector<32x32xf32>
    %c0_7 = arith.constant 0 : index
    %c0_8 = arith.constant 0 : index
    %7 = vector.load %arg6[%c0_7, %c0_8] : memref<32x32xf32, #tpu.memory_space<vmem>>, vector<32x32xf32>
    %c0_9 = arith.constant 0 : index
    %c0_10 = arith.constant 0 : index
    %8 = vector.load %arg5[%c0_9, %c0_10] : memref<32x1xf32, #tpu.memory_space<vmem>>, vector<32x1xf32>
    %9 = vector.shape_cast %8 : vector<32x1xf32> to vector<32x1xf32>
    %10 = vector.broadcast %9 : vector<32x1xf32> to vector<32x256xf32>
    %c0_11 = arith.constant 0 : index
    %c0_12 = arith.constant 0 : index
    %11 = vector.load %arg7[%c0_11, %c0_12] : memref<32x1xf32, #tpu.memory_space<vmem>>, vector<32x1xf32>
    %12 = vector.shape_cast %11 : vector<32x1xf32> to vector<32x1xf32>
    %13 = vector.broadcast %12 : vector<32x1xf32> to vector<32x256xf32>
    %cst_13 = arith.constant dense<0.000000e+00> : vector<32x256xf32>
    %14 = tpu.matmul %6, %5, %cst_13 {dimension_numbers = #tpu.dot_dimension_numbers<[1], [0], [0], [1], [0, 0, 1, 1], [], []>} : vector<32x32xf32>, vector<32x256xf32>, vector<32x256xf32> -> vector<32x256xf32>
    %15 = arith.addf %14, %10 : vector<32x256xf32>
    %16 = arith.addf %15, %5 : vector<32x256xf32>
    %cst_14 = arith.constant dense<0.000000e+00> : vector<32x256xf32>
    %17 = tpu.matmul %7, %16, %cst_14 {dimension_numbers = #tpu.dot_dimension_numbers<[1], [0], [0], [1], [0, 0, 1, 1], [], []>} : vector<32x32xf32>, vector<32x256xf32>, vector<32x256xf32> -> vector<32x256xf32>
    %18 = arith.addf %17, %13 : vector<32x256xf32>
    %cst_15 = arith.constant dense<0.000000e+00> : vector<32x256xf32>
    %19 = tpu.matmul %6, %18, %cst_15 {dimension_numbers = #tpu.dot_dimension_numbers<[1], [0], [0], [1], [0, 0, 1, 1], [], []>} : vector<32x32xf32>, vector<32x256xf32>, vector<32x256xf32> -> vector<32x256xf32>
    %20 = arith.addf %19, %10 : vector<32x256xf32>
    %21 = arith.addf %20, %18 : vector<32x256xf32>
    %cst_16 = arith.constant dense<0.000000e+00> : vector<32x256xf32>
    %22 = tpu.matmul %7, %21, %cst_16 {dimension_numbers = #tpu.dot_dimension_numbers<[1], [0], [0], [1], [0, 0, 1, 1], [], []>} : vector<32x32xf32>, vector<32x256xf32>, vector<32x256xf32> -> vector<32x256xf32>
    %23 = arith.addf %22, %13 : vector<32x256xf32>
    %cst_17 = arith.constant dense<0.000000e+00> : vector<32x256xf32>
    %24 = tpu.matmul %6, %23, %cst_17 {dimension_numbers = #tpu.dot_dimension_numbers<[1], [0], [0], [1], [0, 0, 1, 1], [], []>} : vector<32x32xf32>, vector<32x256xf32>, vector<32x256xf32> -> vector<32x256xf32>
    %25 = arith.addf %24, %10 : vector<32x256xf32>
    %26 = arith.addf %25, %23 : vector<32x256xf32>
    %cst_18 = arith.constant dense<0.000000e+00> : vector<32x256xf32>
    %27 = tpu.matmul %7, %26, %cst_18 {dimension_numbers = #tpu.dot_dimension_numbers<[1], [0], [0], [1], [0, 0, 1, 1], [], []>} : vector<32x32xf32>, vector<32x256xf32>, vector<32x256xf32> -> vector<32x256xf32>
    %28 = arith.addf %27, %13 : vector<32x256xf32>
    %cst_19 = arith.constant 0.000000e+00 : f32
    %29 = vector.broadcast %cst_19 : f32 to vector<32x256xf32>
    %30 = arith.maximumf %28, %29 : vector<32x256xf32>
    %c0_20 = arith.constant 0 : index
    %c0_21 = arith.constant 0 : index
    %31 = vector.load %arg8[%c0_20, %c0_21] : memref<3x32xf32, #tpu.memory_space<vmem>>, vector<3x32xf32>
    %cst_22 = arith.constant dense<0.000000e+00> : vector<3x256xf32>
    %32 = tpu.matmul %31, %30, %cst_22 {dimension_numbers = #tpu.dot_dimension_numbers<[1], [0], [0], [1], [0, 0, 1, 1], [], []>} : vector<3x32xf32>, vector<32x256xf32>, vector<3x256xf32> -> vector<3x256xf32>
    %c0_23 = arith.constant 0 : index
    %c0_24 = arith.constant 0 : index
    %33 = vector.load %arg9[%c0_23, %c0_24] : memref<3x1xf32, #tpu.memory_space<vmem>>, vector<3x1xf32>
    %34 = vector.broadcast %33 : vector<3x1xf32> to vector<3x256xf32>
    %35 = arith.addf %32, %34 : vector<3x256xf32>
    %c0_25 = arith.constant 0 : index
    %c0_26 = arith.constant 0 : index
    %36 = vector.load %arg10[%c0_25, %c0_26] : memref<3x256xf32, #tpu.memory_space<vmem>>, vector<3x256xf32>
    tpu.vector_store %arg10[%c0_25, %c0_26], %35 {strides = array<i32>} : memref<3x256xf32, #tpu.memory_space<vmem>>, vector<3x256xf32>,
    return
  }
  func.func @transform_0(%arg0: i32) -> (i32, i32) {
    %c0_i32 = arith.constant 0 : i32
    %c0_i32_0 = arith.constant 0 : i32
    return %c0_i32, %arg0 : i32, i32
  }
  func.func @transform_1(%arg0: i32) -> (i32, i32) {
    %c0_i32 = arith.constant 0 : i32
    %c0_i32_0 = arith.constant 0 : i32
    %c0_i32_1 = arith.constant 0 : i32
    return %c0_i32, %c0_i32_0 : i32, i32
  }
  func.func @transform_2(%arg0: i32) -> (i32, i32) {
    %c0_i32 = arith.constant 0 : i32
    %c0_i32_0 = arith.constant 0 : i32
    %c0_i32_1 = arith.constant 0 : i32
    return %c0_i32, %c0_i32_0 : i32, i32
  }
  func.func @transform_3(%arg0: i32) -> (i32, i32) {
    %c0_i32 = arith.constant 0 : i32
    %c0_i32_0 = arith.constant 0 : i32
    %c0_i32_1 = arith.constant 0 : i32
    return %c0_i32, %c0_i32_0 : i32, i32
  }
  func.func @transform_4(%arg0: i32) -> (i32, i32) {
    %c0_i32 = arith.constant 0 : i32
    %c0_i32_0 = arith.constant 0 : i32
    %c0_i32_1 = arith.constant 0 : i32
    return %c0_i32, %c0_i32_0 : i32, i32
  }
  func.func @transform_5(%arg0: i32) -> (i32, i32) {
    %c0_i32 = arith.constant 0 : i32
    %c0_i32_0 = arith.constant 0 : i32
    %c0_i32_1 = arith.constant 0 : i32
    return %c0_i32, %c0_i32_0 : i32, i32
  }
  func.func @transform_6(%arg0: i32) -> (i32, i32) {
    %c0_i32 = arith.constant 0 : i32
    %c0_i32_0 = arith.constant 0 : i32
    %c0_i32_1 = arith.constant 0 : i32
    return %c0_i32, %c0_i32_0 : i32, i32
  }
  func.func @transform_7(%arg0: i32) -> (i32, i32) {
    %c0_i32 = arith.constant 0 : i32
    %c0_i32_0 = arith.constant 0 : i32
    %c0_i32_1 = arith.constant 0 : i32
    return %c0_i32, %c0_i32_0 : i32, i32
  }
  func.func @transform_8(%arg0: i32) -> (i32, i32) {
    %c0_i32 = arith.constant 0 : i32
    %c0_i32_0 = arith.constant 0 : i32
    %c0_i32_1 = arith.constant 0 : i32
    return %c0_i32, %c0_i32_0 : i32, i32
  }
  func.func @transform_9(%arg0: i32) -> (i32, i32) {
    %c0_i32 = arith.constant 0 : i32
    %c0_i32_0 = arith.constant 0 : i32
    return %c0_i32, %arg0 : i32, i32
  }
}

</mosaic_0001>

<llo_original>
// kernel: tpu_custom_call.1
$region0: #{tpu_custom_call.1}
  #allocation0 [shape = 'u32[]', space=smem, size = 0x4, offset = 0x4, fixed_abs, tag = 'smem constant byte address 0x4 - core index']
  #allocation1 [shape = 'u32[144,128]{1,0:T(1,128)}', space=vmem, size = 0x12000, scoped, tag = 'internal scratch']
  %s0 = inlined_call_operand.vmem [shape: f32[19,256], index: 0, kind: input, shape index: {}]
  %s1 = inlined_call_operand.vmem [shape: f32[32,19], index: 1, kind: input, shape index: {}]
  %s2 = inlined_call_operand.vmem [shape: f32[32,1], index: 2, kind: input, shape index: {}]
  %s3 = inlined_call_operand.vmem [shape: f32[32,32], index: 3, kind: input, shape index: {}]
  %s4 = inlined_call_operand.vmem [shape: f32[32,1], index: 4, kind: input, shape index: {}]
  %s5 = inlined_call_operand.vmem [shape: f32[32,32], index: 5, kind: input, shape index: {}]
  %s6 = inlined_call_operand.vmem [shape: f32[32,1], index: 6, kind: input, shape index: {}]
  %s7 = inlined_call_operand.vmem [shape: f32[3,32], index: 7, kind: input, shape index: {}]
  %s8 = inlined_call_operand.vmem [shape: f32[3,1], index: 8, kind: input, shape index: {}]
  %s9 = inlined_call_operand.hbm [shape: f32[3,256], index: 9, kind: output, shape index: {}]
  %s10 = sld [smem:[#allocation0]]
  $region46: #{tpu_custom_call.1} parent=0
    _
  %s12 = ssub.s32 1, %s10
  %s13 = scalar_select 0, %s12, %s10
  $region1: #{tpu_custom_call.1} parent=0
    #allocation2 [shape = 'u8[4096]{0}', space=vmem, size = 0x1000, scoped, tag = 'output window, operand 0, single buffered']
    #allocation3 [shape = 's32[1]{0}', space=sflag, size = 0x4, scoped, tag = 'scoped memory for tpu_custom_call.1']
    %14 = vsyncpa [#allocation3], 0
    // Predicated region
    $region2: #{tpu_custom_call.1} parent=1 // pred_check
      _
    $region3: #{tpu_custom_call.1} parent=1 // pred_check_branch
      %16 = sbr.rel (0) target = $region5
    $region4: #{tpu_custom_call.1} parent=1 // pred_region
      _
    $region5: #{tpu_custom_call.1} parent=1 // pred_fallthru
      _
    // Predicated region
    $region6: #{tpu_custom_call.1} parent=1 // pred_check
      _
    $region7: #{tpu_custom_call.1} parent=1 // pred_check_branch
      %18 = sbr.rel (0) target = $region9
    $region8: #{tpu_custom_call.1} parent=1 // pred_region
      _
    $region9: #{tpu_custom_call.1} parent=1 // pred_fallthru
      _
    // Predicated region
    $region10: #{tpu_custom_call.1} parent=1 // pred_check
      _
    $region11: #{tpu_custom_call.1} parent=1 // pred_check_branch
      %20 = sbr.rel (0) target = $region13
    $region12: #{tpu_custom_call.1} parent=1 // pred_region
      _
    $region13: #{tpu_custom_call.1} parent=1 // pred_fallthru
      _
    // Predicated region
    $region14: #{tpu_custom_call.1} parent=1 // pred_check
      _
    $region15: #{tpu_custom_call.1} parent=1 // pred_check_branch
      %22 = sbr.rel (0) target = $region17
    $region16: #{tpu_custom_call.1} parent=1 // pred_region
      _
    $region17: #{tpu_custom_call.1} parent=1 // pred_fallthru
      _
    // Predicated region
    $region18: #{tpu_custom_call.1} parent=1 // pred_check
      _
    $region19: #{tpu_custom_call.1} parent=1 // pred_check_branch
      %24 = sbr.rel (0) target = $region21
    $region20: #{tpu_custom_call.1} parent=1 // pred_region
      _
    $region21: #{tpu_custom_call.1} parent=1 // pred_fallthru
      _
    // Predicated region
    $region22: #{tpu_custom_call.1} parent=1 // pred_check
      _
    $region23: #{tpu_custom_call.1} parent=1 // pred_check_branch
      %26 = sbr.rel (0) target = $region25
    $region24: #{tpu_custom_call.1} parent=1 // pred_region
      _
    $region25: #{tpu_custom_call.1} parent=1 // pred_fallthru
      _
    // Predicated region
    $region26: #{tpu_custom_call.1} parent=1 // pred_check
      _
    $region27: #{tpu_custom_call.1} parent=1 // pred_check_branch
      %28 = sbr.rel (0) target = $region29
    $region28: #{tpu_custom_call.1} parent=1 // pred_region
      _
    $region29: #{tpu_custom_call.1} parent=1 // pred_fallthru
      _
    // Predicated region
    $region30: #{tpu_custom_call.1} parent=1 // pred_check
      _
    $region31: #{tpu_custom_call.1} parent=1 // pred_check_branch
      %30 = sbr.rel (0) target = $region33
    $region32: #{tpu_custom_call.1} parent=1 // pred_region
      _
    $region33: #{tpu_custom_call.1} parent=1 // pred_fallthru
      _
    // Predicated region
    $region34: #{tpu_custom_call.1} parent=1 // pred_check
      _
    $region35: #{tpu_custom_call.1} parent=1 // pred_check_branch
      %32 = sbr.rel (0) target = $region37
    $region36: #{tpu_custom_call.1} parent=1 // pred_region
      _
    $region37: #{tpu_custom_call.1} parent=1 // pred_fallthru
      _
    %v33 = vld [vmem:[%s1] sm:$0xff]
    %v34 = vld [vmem:[%s1 + $0x8] sm:$0xff]
    %v35 = vld [vmem:[%s1 + $0x10] sm:$0xff]
    %v36 = vld [vmem:[%s1 + $0x18] sm:$0xff]
    %v37 = vld [vmem:[%s0] sm:$0xff]
    %v38 = vld [vmem:[%s0 + $0x8] sm:$0xff]
    %v39 = vld [vmem:[%s0 + $0x10] sm:$0xff]
    %v40 = vld [vmem:[%s0 + $0x18] sm:$0xff]
    %v41 = vld [vmem:[%s0 + $0x20] sm:$0x7]
    %v42 = vld [vmem:[%s0 + $0x28] sm:$0x7]
    %v43 = vld [vmem:[%s2] sm:$0xff]
    %v44 = vld [vmem:[%s2 + $0x8] sm:$0xff]
    %v45 = vld [vmem:[%s2 + $0x10] sm:$0xff]
    %v46 = vld [vmem:[%s2 + $0x18] sm:$0xff]
    %48 = vset.pattern.permute.xlu0 0
    %49 = vperm.xlu0 %48, %v43
    %v50 = vpop.permute.xlu0 %49
    %53 = vset.pattern.permute.xlu0 0
    %54 = vperm.xlu0 %53, %v44
    %v55 = vpop.permute.xlu0 %54
    %58 = vset.pattern.permute.xlu0 0
    %59 = vperm.xlu0 %58, %v45
    %v60 = vpop.permute.xlu0 %59
    %63 = vset.pattern.permute.xlu0 0
    %64 = vperm.xlu0 %63, %v46
    %v65 = vpop.permute.xlu0 %64
    %vm67 = vcmask 154624
    %v69 = vsel %vm67, %v33, 0
    %v72 = vsel %vm67, %v34, 0
    %v75 = vsel %vm67, %v35, 0
    %v78 = vsel %vm67, %v36, 0
    %vm80 = vcmask 1042432
    %v82 = vsel %vm80, %v41, 0
    %v85 = vsel %vm80, %v42, 0
    %87 = vmatprep.subr.mxu0 %v38
    %88 = vmatpush1.msra.mxu0 %v37
    %89 = vmatprep.subr.mxu0 %v40
    %90 = vmatpush1.msra.mxu0 %v39
    %91 = vmatprep.subr.mxu0 %v85
    %92 = vmatpush1.msra.mxu0 %v82
    %93 = vmatprep.subr.mxu0 0.0
    %94 = vmatpush1.msra.mxu0 0.0
    %95 = vmatprep.subr.mxu0 0.0
    %96 = vmatpush1.msra.mxu0 0.0
    %97 = vmatprep.subr.mxu0 0.0
    %98 = vmatpush1.msra.mxu0 0.0
    %99 = vmatprep.subr.mxu0 0.0
    %100 = vmatpush1.msra.mxu0 0.0
    %101 = vmatprep.subr.mxu0 0.0
    %102 = vmatpush1.msra.mxu0 0.0
    %103 = vmatprep.subr.mxu0 0.0
    %104 = vmatpush1.msra.mxu0 0.0
    %105 = vmatprep.subr.mxu0 0.0
    %106 = vmatpush1.msra.mxu0 0.0
    %107 = vmatprep.subr.mxu0 0.0
    %108 = vmatpush1.msra.mxu0 0.0
    %109 = vmatprep.subr.mxu0 0.0
    %110 = vmatpush1.msra.mxu0 0.0
    %111 = vmatprep.subr.mxu0 0.0
    %112 = vmatpush1.msra.mxu0 0.0
    %113 = vmatprep.subr.mxu0 0.0
    %114 = vmatpush1.msra.mxu0 0.0
    %115 = vmatprep.subr.mxu0 0.0
    %116 = vmatpush1.msra.mxu0 0.0
    %117 = vmatprep.subr.mxu0 0.0
    %118 = vmatpush1.msra.mxu0 0.0
    %119 = vmatprep.subr.mxu0 0.0
    %120 = vmatpush1.msra.mxu0 0.0
    %121 = vmatprep.subr.mxu0 0.0
    %122 = vmatpush1.msra.mxu0 0.0
    %123 = vmatprep.subr.mxu0 0.0
    %124 = vmatpush1.msra.mxu0 0.0
    %125 = vmatprep.subr.mxu0 0.0
    %126 = vmatpush1.msra.mxu0 0.0
    %127 = vmatprep.subr.mxu0 0.0
    %128 = vmatpush1.msra.mxu0 0.0
    %129 = vmatprep.subr.mxu0 0.0
    %130 = vmatpush1.msra.mxu0 0.0
    %131 = vmatprep.subr.mxu0 0.0
    %132 = vmatpush1.msra.mxu0 0.0
    %133 = vmatprep.subr.mxu0 0.0
    %134 = vmatpush1.msra.mxu0 0.0
    %135 = vmatprep.subr.mxu0 0.0
    %136 = vmatpush1.msra.mxu0 0.0
    %137 = vmatprep.subr.mxu0 0.0
    %138 = vmatpush1.msra.mxu0 0.0
    %139 = vmatprep.subr.mxu0 0.0
    %140 = vmatpush1.msra.mxu0 0.0
    %141 = vmatprep.subr.mxu0 0.0
    %142 = vmatpush1.msra.mxu0 0.0
    %143 = vmatprep.subr.mxu0 0.0
    %144 = vmatpush1.msra.mxu0 0.0
    %145 = vmatprep.subr.mxu0 0.0
    %146 = vmatpush1.msra.mxu0 0.0
    %147 = vmatprep.subr.mxu0 0.0
    %148 = vmatpush1.msra.mxu0 0.0
    %149 = vmatprep.subr.mxu0 0.0
    %150 = vmatpush1.msra.mxu0 0.0
    %151 = vmatprep.mubr.f32.mxu0 0.0
    %152 = vmatmul.mubr.f32.gmra.mrb[0].mxu0 %v69
    %v153 = vpop.f32.mrb[0].mxu0
    %v154 = vadd.f32 %v50, %v153
    %v155 = vpop.f32.mrb[0].mxu0
    %v156 = vadd.f32 %v50, %v155
    %157 = vmatprep.mubr.f32.mxu0 0.0
    %158 = vmatmul.mubr.f32.gmra.mrb[0].mxu0 %v72
    %v159 = vpop.f32.mrb[0].mxu0
    %v160 = vadd.f32 %v55, %v159
    %v161 = vpop.f32.mrb[0].mxu0
    %v162 = vadd.f32 %v55, %v161
    %163 = vmatprep.mubr.f32.mxu0 0.0
    %164 = vmatmul.mubr.f32.gmra.mrb[0].mxu0 %v75
    %v165 = vpop.f32.mrb[0].mxu0
    %v166 = vadd.f32 %v60, %v165
    %v167 = vpop.f32.mrb[0].mxu0
    %v168 = vadd.f32 %v60, %v167
    %169 = vmatprep.mubr.f32.mxu0 0.0
    %170 = vmatmul.mubr.f32.gmra.mrb[0].mxu0 %v78
    %v171 = vpop.f32.mrb[0].mxu0
    %v172 = vadd.f32 %v65, %v171
    %v173 = vpop.f32.mrb[0].mxu0
    %v174 = vadd.f32 %v65, %v173
    %175 = vdwg.mxu0
    %v176 = vld [vmem:[%s3] sm:$0xff]
    %v177 = vld [vmem:[%s3 + $0x8] sm:$0xff]
    %v178 = vld [vmem:[%s3 + $0x10] sm:$0xff]
    %v179 = vld [vmem:[%s3 + $0x18] sm:$0xff]
    %v180 = vld [vmem:[%s5] sm:$0xff]
    %v181 = vld [vmem:[%s5 + $0x8] sm:$0xff]
    %v182 = vld [vmem:[%s5 + $0x10] sm:$0xff]
    %v183 = vld [vmem:[%s5 + $0x18] sm:$0xff]
    %v184 = vld [vmem:[%s4] sm:$0xff]
    %v185 = vld [vmem:[%s4 + $0x8] sm:$0xff]
    %v186 = vld [vmem:[%s4 + $0x10] sm:$0xff]
    %v187 = vld [vmem:[%s4 + $0x18] sm:$0xff]
    %189 = vset.pattern.permute.xlu0 0
    %190 = vperm.xlu0 %189, %v184
    %v191 = vpop.permute.xlu0 %190
    %194 = vset.pattern.permute.xlu0 0
    %195 = vperm.xlu0 %194, %v185
    %v196 = vpop.permute.xlu0 %195
    %199 = vset.pattern.permute.xlu0 0
    %200 = vperm.xlu0 %199, %v186
    %v201 = vpop.permute.xlu0 %200
    %204 = vset.pattern.permute.xlu0 0
    %205 = vperm.xlu0 %204, %v187
    %v206 = vpop.permute.xlu0 %205
    %v208 = vld [vmem:[%s6] sm:$0xff]
    %v209 = vld [vmem:[%s6 + $0x8] sm:$0xff]
    %v210 = vld [vmem:[%s6 + $0x10] sm:$0xff]
    %v211 = vld [vmem:[%s6 + $0x18] sm:$0xff]
    %213 = vset.pattern.permute.xlu0 0
    %214 = vperm.xlu0 %213, %v208
    %v215 = vpop.permute.xlu0 %214
    %218 = vset.pattern.permute.xlu0 0
    %219 = vperm.xlu0 %218, %v209
    %v220 = vpop.permute.xlu0 %219
    %223 = vset.pattern.permute.xlu0 0
    %224 = vperm.xlu0 %223, %v210
    %v225 = vpop.permute.xlu0 %224
    %228 = vset.pattern.permute.xlu0 0
    %229 = vperm.xlu0 %228, %v211
    %v230 = vpop.permute.xlu0 %229
    %vm232 = vcmask 261120
    %v234 = vsel %vm232, %v176, 0
    %v237 = vsel %vm232, %v177, 0
    %v240 = vsel %vm232, %v178, 0
    %v243 = vsel %vm232, %v179, 0
    %245 = vmatprep.subr.mxu0 %v156
    %246 = vmatpush1.msra.mxu0 %v154
    %247 = vmatprep.subr.mxu0 %v162
    %248 = vmatpush1.msra.mxu0 %v160
    %249 = vmatprep.subr.mxu0 %v168
    %250 = vmatpush1.msra.mxu0 %v166
    %251 = vmatprep.subr.mxu0 %v174
    %252 = vmatpush1.msra.mxu0 %v172
    %253 = vmatprep.subr.mxu0 0.0
    %254 = vmatpush1.msra.mxu0 0.0
    %255 = vmatprep.subr.mxu0 0.0
    %256 = vmatpush1.msra.mxu0 0.0
    %257 = vmatprep.subr.mxu0 0.0
    %258 = vmatpush1.msra.mxu0 0.0
    %259 = vmatprep.subr.mxu0 0.0
    %260 = vmatpush1.msra.mxu0 0.0
    %261 = vmatprep.subr.mxu0 0.0
    %262 = vmatpush1.msra.mxu0 0.0
    %263 = vmatprep.subr.mxu0 0.0
    %264 = vmatpush1.msra.mxu0 0.0
    %265 = vmatprep.subr.mxu0 0.0
    %266 = vmatpush1.msra.mxu0 0.0
    %267 = vmatprep.subr.mxu0 0.0
    %268 = vmatpush1.msra.mxu0 0.0
    %269 = vmatprep.subr.mxu0 0.0
    %270 = vmatpush1.msra.mxu0 0.0
    %271 = vmatprep.subr.mxu0 0.0
    %272 = vmatpush1.msra.mxu0 0.0
    %273 = vmatprep.subr.mxu0 0.0
    %274 = vmatpush1.msra.mxu0 0.0
    %275 = vmatprep.subr.mxu0 0.0
    %276 = vmatpush1.msra.mxu0 0.0
    %277 = vmatprep.subr.mxu0 0.0
    %278 = vmatpush1.msra.mxu0 0.0
    %279 = vmatprep.subr.mxu0 0.0
    %280 = vmatpush1.msra.mxu0 0.0
    %281 = vmatprep.subr.mxu0 0.0
    %282 = vmatpush1.msra.mxu0 0.0
    %283 = vmatprep.subr.mxu0 0.0
    %284 = vmatpush1.msra.mxu0 0.0
    %285 = vmatprep.subr.mxu0 0.0
    %286 = vmatpush1.msra.mxu0 0.0
    %287 = vmatprep.subr.mxu0 0.0
    %288 = vmatpush1.msra.mxu0 0.0
    %289 = vmatprep.subr.mxu0 0.0
    %290 = vmatpush1.msra.mxu0 0.0
    %291 = vmatprep.subr.mxu0 0.0
    %292 = vmatpush1.msra.mxu0 0.0
    %293 = vmatprep.subr.mxu0 0.0
    %294 = vmatpush1.msra.mxu0 0.0
    %295 = vmatprep.subr.mxu0 0.0
    %296 = vmatpush1.msra.mxu0 0.0
    %297 = vmatprep.subr.mxu0 0.0
    %298 = vmatpush1.msra.mxu0 0.0
    %299 = vmatprep.subr.mxu0 0.0
    %300 = vmatpush1.msra.mxu0 0.0
    %301 = vmatprep.subr.mxu0 0.0
    %302 = vmatpush1.msra.mxu0 0.0
    %303 = vmatprep.subr.mxu0 0.0
    %304 = vmatpush1.msra.mxu0 0.0
    %305 = vmatprep.subr.mxu0 0.0
    %306 = vmatpush1.msra.mxu0 0.0
    %307 = vmatprep.subr.mxu0 0.0
    %308 = vmatpush1.msra.mxu0 0.0
    %309 = vmatprep.mubr.f32.mxu0 0.0
    %310 = vmatmul.mubr.f32.gmra.mrb[0].mxu0 %v234
    %v311 = vpop.f32.mrb[0].mxu0
    %v312 = vadd.f32 %v191, %v311
    %v313 = vpop.f32.mrb[0].mxu0
    %v314 = vadd.f32 %v191, %v313
    %315 = vmatprep.mubr.f32.mxu0 0.0
    %316 = vmatmul.mubr.f32.gmra.mrb[0].mxu0 %v237
    %v317 = vpop.f32.mrb[0].mxu0
    %v318 = vadd.f32 %v196, %v317
    %v319 = vpop.f32.mrb[0].mxu0
    %v320 = vadd.f32 %v196, %v319
    %321 = vmatprep.mubr.f32.mxu0 0.0
    %322 = vmatmul.mubr.f32.gmra.mrb[0].mxu0 %v240
    %v323 = vpop.f32.mrb[0].mxu0
    %v324 = vadd.f32 %v201, %v323
    %v325 = vpop.f32.mrb[0].mxu0
    %v326 = vadd.f32 %v201, %v325
    %327 = vmatprep.mubr.f32.mxu0 0.0
    %328 = vmatmul.mubr.f32.gmra.mrb[0].mxu0 %v243
    %v329 = vpop.f32.mrb[0].mxu0
    %v330 = vadd.f32 %v206, %v329
    %v331 = vpop.f32.mrb[0].mxu0
    %v332 = vadd.f32 %v206, %v331
    %333 = vdwg.mxu0
    %v334 = vadd.f32 %v312, %v154
    %v335 = vadd.f32 %v314, %v156
    %v336 = vadd.f32 %v318, %v160
    %v337 = vadd.f32 %v320, %v162
    %v338 = vadd.f32 %v324, %v166
    %v339 = vadd.f32 %v326, %v168
    %v340 = vadd.f32 %v330, %v172
    %v341 = vadd.f32 %v332, %v174
    %v343 = vsel %vm232, %v180, 0
    %v346 = vsel %vm232, %v181, 0
    %v349 = vsel %vm232, %v182, 0
    %v352 = vsel %vm232, %v183, 0
    %354 = vmatprep.subr.mxu0 %v335
    %355 = vmatpush1.msra.mxu0 %v334
    %356 = vmatprep.subr.mxu0 %v337
    %357 = vmatpush1.msra.mxu0 %v336
    %358 = vmatprep.subr.mxu0 %v339
    %359 = vmatpush1.msra.mxu0 %v338
    %360 = vmatprep.subr.mxu0 %v341
    %361 = vmatpush1.msra.mxu0 %v340
    %362 = vmatprep.subr.mxu0 0.0
    %363 = vmatpush1.msra.mxu0 0.0
    %364 = vmatprep.subr.mxu0 0.0
    %365 = vmatpush1.msra.mxu0 0.0
    %366 = vmatprep.subr.mxu0 0.0
    %367 = vmatpush1.msra.mxu0 0.0
    %368 = vmatprep.subr.mxu0 0.0
    %369 = vmatpush1.msra.mxu0 0.0
    %370 = vmatprep.subr.mxu0 0.0
    %371 = vmatpush1.msra.mxu0 0.0
    %372 = vmatprep.subr.mxu0 0.0
    %373 = vmatpush1.msra.mxu0 0.0
    %374 = vmatprep.subr.mxu0 0.0
    %375 = vmatpush1.msra.mxu0 0.0
    %376 = vmatprep.subr.mxu0 0.0
    %377 = vmatpush1.msra.mxu0 0.0
    %378 = vmatprep.subr.mxu0 0.0
    %379 = vmatpush1.msra.mxu0 0.0
    %380 = vmatprep.subr.mxu0 0.0
    %381 = vmatpush1.msra.mxu0 0.0
    %382 = vmatprep.subr.mxu0 0.0
    %383 = vmatpush1.msra.mxu0 0.0
    %384 = vmatprep.subr.mxu0 0.0
    %385 = vmatpush1.msra.mxu0 0.0
    %386 = vmatprep.subr.mxu0 0.0
    %387 = vmatpush1.msra.mxu0 0.0
    %388 = vmatprep.subr.mxu0 0.0
    %389 = vmatpush1.msra.mxu0 0.0
    %390 = vmatprep.subr.mxu0 0.0
    %391 = vmatpush1.msra.mxu0 0.0
    %392 = vmatprep.subr.mxu0 0.0
    %393 = vmatpush1.msra.mxu0 0.0
    %394 = vmatprep.subr.mxu0 0.0
    %395 = vmatpush1.msra.mxu0 0.0
    %396 = vmatprep.subr.mxu0 0.0
    %397 = vmatpush1.msra.mxu0 0.0
    %398 = vmatprep.subr.mxu0 0.0
    %399 = vmatpush1.msra.mxu0 0.0
    %400 = vmatprep.subr.mxu0 0.0
    %401 = vmatpush1.msra.mxu0 0.0
    %402 = vmatprep.subr.mxu0 0.0
    %403 = vmatpush1.msra.mxu0 0.0
    %404 = vmatprep.subr.mxu0 0.0
    %405 = vmatpush1.msra.mxu0 0.0
    %406 = vmatprep.subr.mxu0 0.0
    %407 = vmatpush1.msra.mxu0 0.0
    %408 = vmatprep.subr.mxu0 0.0
    %409 = vmatpush1.msra.mxu0 0.0
    %410 = vmatprep.subr.mxu0 0.0
    %411 = vmatpush1.msra.mxu0 0.0
    %412 = vmatprep.subr.mxu0 0.0
    %413 = vmatpush1.msra.mxu0 0.0
    %414 = vmatprep.subr.mxu0 0.0
    %415 = vmatpush1.msra.mxu0 0.0
    %416 = vmatprep.subr.mxu0 0.0
    %417 = vmatpush1.msra.mxu0 0.0
    %418 = vmatprep.mubr.f32.mxu0 0.0
    %419 = vmatmul.mubr.f32.gmra.mrb[0].mxu0 %v343
    %v420 = vpop.f32.mrb[0].mxu0
    %v421 = vadd.f32 %v215, %v420
    %v422 = vpop.f32.mrb[0].mxu0
    %v423 = vadd.f32 %v215, %v422
    %424 = vmatprep.mubr.f32.mxu0 0.0
    %425 = vmatmul.mubr.f32.gmra.mrb[0].mxu0 %v346
    %v426 = vpop.f32.mrb[0].mxu0
    %v427 = vadd.f32 %v220, %v426
    %v428 = vpop.f32.mrb[0].mxu0
    %v429 = vadd.f32 %v220, %v428
    %430 = vmatprep.mubr.f32.mxu0 0.0
    %431 = vmatmul.mubr.f32.gmra.mrb[0].mxu0 %v349
    %v432 = vpop.f32.mrb[0].mxu0
    %v433 = vadd.f32 %v225, %v432
    %v434 = vpop.f32.mrb[0].mxu0
    %v435 = vadd.f32 %v225, %v434
    %436 = vmatprep.mubr.f32.mxu0 0.0
    %437 = vmatmul.mubr.f32.gmra.mrb[0].mxu0 %v352
    %v438 = vpop.f32.mrb[0].mxu0
    %v439 = vadd.f32 %v230, %v438
    %v440 = vpop.f32.mrb[0].mxu0
    %v441 = vadd.f32 %v230, %v440
    %442 = vdwg.mxu0
    %443 = vmatprep.subr.mxu0 %v423
    %444 = vmatpush1.msra.mxu0 %v421
    %445 = vmatprep.subr.mxu0 %v429
    %446 = vmatpush1.msra.mxu0 %v427
    %447 = vmatprep.subr.mxu0 %v435
    %448 = vmatpush1.msra.mxu0 %v433
    %449 = vmatprep.subr.mxu0 %v441
    %450 = vmatpush1.msra.mxu0 %v439
    %451 = vmatprep.subr.mxu0 0.0
    %452 = vmatpush1.msra.mxu0 0.0
    %453 = vmatprep.subr.mxu0 0.0
    %454 = vmatpush1.msra.mxu0 0.0
    %455 = vmatprep.subr.mxu0 0.0
    %456 = vmatpush1.msra.mxu0 0.0
    %457 = vmatprep.subr.mxu0 0.0
    %458 = vmatpush1.msra.mxu0 0.0
    %459 = vmatprep.subr.mxu0 0.0
    %460 = vmatpush1.msra.mxu0 0.0
    %461 = vmatprep.subr.mxu0 0.0
    %462 = vmatpush1.msra.mxu0 0.0
    %463 = vmatprep.subr.mxu0 0.0
    %464 = vmatpush1.msra.mxu0 0.0
    %465 = vmatprep.subr.mxu0 0.0
    %466 = vmatpush1.msra.mxu0 0.0
    %467 = vmatprep.subr.mxu0 0.0
    %468 = vmatpush1.msra.mxu0 0.0
    %469 = vmatprep.subr.mxu0 0.0
    %470 = vmatpush1.msra.mxu0 0.0
    %471 = vmatprep.subr.mxu0 0.0
    %472 = vmatpush1.msra.mxu0 0.0
    %473 = vmatprep.subr.mxu0 0.0
    %474 = vmatpush1.msra.mxu0 0.0
    %475 = vmatprep.subr.mxu0 0.0
    %476 = vmatpush1.msra.mxu0 0.0
    %477 = vmatprep.subr.mxu0 0.0
    %478 = vmatpush1.msra.mxu0 0.0
    %479 = vmatprep.subr.mxu0 0.0
    %480 = vmatpush1.msra.mxu0 0.0
    %481 = vmatprep.subr.mxu0 0.0
    %482 = vmatpush1.msra.mxu0 0.0
    %483 = vmatprep.subr.mxu0 0.0
    %484 = vmatpush1.msra.mxu0 0.0
    %485 = vmatprep.subr.mxu0 0.0
    %486 = vmatpush1.msra.mxu0 0.0
    %487 = vmatprep.subr.mxu0 0.0
    %488 = vmatpush1.msra.mxu0 0.0
    %489 = vmatprep.subr.mxu0 0.0
    %490 = vmatpush1.msra.mxu0 0.0
    %491 = vmatprep.subr.mxu0 0.0
    %492 = vmatpush1.msra.mxu0 0.0
    %493 = vmatprep.subr.mxu0 0.0
    %494 = vmatpush1.msra.mxu0 0.0
    %495 = vmatprep.subr.mxu0 0.0
    %496 = vmatpush1.msra.mxu0 0.0
    %497 = vmatprep.subr.mxu0 0.0
    %498 = vmatpush1.msra.mxu0 0.0
    %499 = vmatprep.subr.mxu0 0.0
    %500 = vmatpush1.msra.mxu0 0.0
    %501 = vmatprep.subr.mxu0 0.0
    %502 = vmatpush1.msra.mxu0 0.0
    %503 = vmatprep.subr.mxu0 0.0
    %504 = vmatpush1.msra.mxu0 0.0
    %505 = vmatprep.subr.mxu0 0.0
    %506 = vmatpush1.msra.mxu0 0.0
    %507 = vmatprep.mubr.f32.mxu0 0.0
    %508 = vmatmul.mubr.f32.gmra.mrb[0].mxu0 %v234
    %v509 = vpop.f32.mrb[0].mxu0
    %v510 = vadd.f32 %v191, %v509
    %v511 = vpop.f32.mrb[0].mxu0
    %v512 = vadd.f32 %v191, %v511
    %513 = vmatprep.mubr.f32.mxu0 0.0
    %514 = vmatmul.mubr.f32.gmra.mrb[0].mxu0 %v237
    %v515 = vpop.f32.mrb[0].mxu0
    %v516 = vadd.f32 %v196, %v515
    %v517 = vpop.f32.mrb[0].mxu0
    %v518 = vadd.f32 %v196, %v517
    %519 = vmatprep.mubr.f32.mxu0 0.0
    %520 = vmatmul.mubr.f32.gmra.mrb[0].mxu0 %v240
    %v521 = vpop.f32.mrb[0].mxu0
    %v522 = vadd.f32 %v201, %v521
    %v523 = vpop.f32.mrb[0].mxu0
    %v524 = vadd.f32 %v201, %v523
    %525 = vmatprep.mubr.f32.mxu0 0.0
    %526 = vmatmul.mubr.f32.gmra.mrb[0].mxu0 %v243
    %v527 = vpop.f32.mrb[0].mxu0
    %v528 = vadd.f32 %v206, %v527
    %v529 = vpop.f32.mrb[0].mxu0
    %v530 = vadd.f32 %v206, %v529
    %531 = vdwg.mxu0
    %v532 = vadd.f32 %v510, %v421
    %v533 = vadd.f32 %v512, %v423
    %v534 = vadd.f32 %v516, %v427
    %v535 = vadd.f32 %v518, %v429
    %v536 = vadd.f32 %v522, %v433
    %v537 = vadd.f32 %v524, %v435
    %v538 = vadd.f32 %v528, %v439
    %v539 = vadd.f32 %v530, %v441
    %540 = vmatprep.subr.mxu0 %v533
    %541 = vmatpush1.msra.mxu0 %v532
    %542 = vmatprep.subr.mxu0 %v535
    %543 = vmatpush1.msra.mxu0 %v534
    %544 = vmatprep.subr.mxu0 %v537
    %545 = vmatpush1.msra.mxu0 %v536
    %546 = vmatprep.subr.mxu0 %v539
    %547 = vmatpush1.msra.mxu0 %v538
    %548 = vmatprep.subr.mxu0 0.0
    %549 = vmatpush1.msra.mxu0 0.0
    %550 = vmatprep.subr.mxu0 0.0
    %551 = vmatpush1.msra.mxu0 0.0
    %552 = vmatprep.subr.mxu0 0.0
    %553 = vmatpush1.msra.mxu0 0.0
    %554 = vmatprep.subr.mxu0 0.0
    %555 = vmatpush1.msra.mxu0 0.0
    %556 = vmatprep.subr.mxu0 0.0
    %557 = vmatpush1.msra.mxu0 0.0
    %558 = vmatprep.subr.mxu0 0.0
    %559 = vmatpush1.msra.mxu0 0.0
    %560 = vmatprep.subr.mxu0 0.0
    %561 = vmatpush1.msra.mxu0 0.0
    %562 = vmatprep.subr.mxu0 0.0
    %563 = vmatpush1.msra.mxu0 0.0
    %564 = vmatprep.subr.mxu0 0.0
    %565 = vmatpush1.msra.mxu0 0.0
    %566 = vmatprep.subr.mxu0 0.0
    %567 = vmatpush1.msra.mxu0 0.0
    %568 = vmatprep.subr.mxu0 0.0
    %569 = vmatpush1.msra.mxu0 0.0
    %570 = vmatprep.subr.mxu0 0.0
    %571 = vmatpush1.msra.mxu0 0.0
    %572 = vmatprep.subr.mxu0 0.0
    %573 = vmatpush1.msra.mxu0 0.0
    %574 = vmatprep.subr.mxu0 0.0
    %575 = vmatpush1.msra.mxu0 0.0
    %576 = vmatprep.subr.mxu0 0.0
    %577 = vmatpush1.msra.mxu0 0.0
    %578 = vmatprep.subr.mxu0 0.0
    %579 = vmatpush1.msra.mxu0 0.0
    %580 = vmatprep.subr.mxu0 0.0
    %581 = vmatpush1.msra.mxu0 0.0
    %582 = vmatprep.subr.mxu0 0.0
    %583 = vmatpush1.msra.mxu0 0.0
    %584 = vmatprep.subr.mxu0 0.0
    %585 = vmatpush1.msra.mxu0 0.0
    %586 = vmatprep.subr.mxu0 0.0
    %587 = vmatpush1.msra.mxu0 0.0
    %588 = vmatprep.subr.mxu0 0.0
    %589 = vmatpush1.msra.mxu0 0.0
    %590 = vmatprep.subr.mxu0 0.0
    %591 = vmatpush1.msra.mxu0 0.0
    %592 = vmatprep.subr.mxu0 0.0
    %593 = vmatpush1.msra.mxu0 0.0
    %594 = vmatprep.subr.mxu0 0.0
    %595 = vmatpush1.msra.mxu0 0.0
    %596 = vmatprep.subr.mxu0 0.0
    %597 = vmatpush1.msra.mxu0 0.0
    %598 = vmatprep.subr.mxu0 0.0
    %599 = vmatpush1.msra.mxu0 0.0
    %600 = vmatprep.subr.mxu0 0.0
    %601 = vmatpush1.msra.mxu0 0.0
    %602 = vmatprep.subr.mxu0 0.0
    %603 = vmatpush1.msra.mxu0 0.0
    %604 = vmatprep.mubr.f32.mxu0 0.0
    %605 = vmatmul.mubr.f32.gmra.mrb[0].mxu0 %v343
    %v606 = vpop.f32.mrb[0].mxu0
    %v607 = vadd.f32 %v215, %v606
    %v608 = vpop.f32.mrb[0].mxu0
    %v609 = vadd.f32 %v215, %v608
    %610 = vmatprep.mubr.f32.mxu0 0.0
    %611 = vmatmul.mubr.f32.gmra.mrb[0].mxu0 %v346
    %v612 = vpop.f32.mrb[0].mxu0
    %v613 = vadd.f32 %v220, %v612
    %v614 = vpop.f32.mrb[0].mxu0
    %v615 = vadd.f32 %v220, %v614
    %616 = vmatprep.mubr.f32.mxu0 0.0
    %617 = vmatmul.mubr.f32.gmra.mrb[0].mxu0 %v349
    %v618 = vpop.f32.mrb[0].mxu0
    %v619 = vadd.f32 %v225, %v618
    %v620 = vpop.f32.mrb[0].mxu0
    %v621 = vadd.f32 %v225, %v620
    %622 = vmatprep.mubr.f32.mxu0 0.0
    %623 = vmatmul.mubr.f32.gmra.mrb[0].mxu0 %v352
    %v624 = vpop.f32.mrb[0].mxu0
    %v625 = vadd.f32 %v230, %v624
    %v626 = vpop.f32.mrb[0].mxu0
    %v627 = vadd.f32 %v230, %v626
    %628 = vdwg.mxu0
    %629 = vmatprep.subr.mxu0 %v609
    %630 = vmatpush1.msra.mxu0 %v607
    %631 = vmatprep.subr.mxu0 %v615
    %632 = vmatpush1.msra.mxu0 %v613
    %633 = vmatprep.subr.mxu0 %v621
    %634 = vmatpush1.msra.mxu0 %v619
    %635 = vmatprep.subr.mxu0 %v627
    %636 = vmatpush1.msra.mxu0 %v625
    %637 = vmatprep.subr.mxu0 0.0
    %638 = vmatpush1.msra.mxu0 0.0
    %639 = vmatprep.subr.mxu0 0.0
    %640 = vmatpush1.msra.mxu0 0.0
    %641 = vmatprep.subr.mxu0 0.0
    %642 = vmatpush1.msra.mxu0 0.0
    %643 = vmatprep.subr.mxu0 0.0
    %644 = vmatpush1.msra.mxu0 0.0
    %645 = vmatprep.subr.mxu0 0.0
    %646 = vmatpush1.msra.mxu0 0.0
    %647 = vmatprep.subr.mxu0 0.0
    %648 = vmatpush1.msra.mxu0 0.0
    %649 = vmatprep.subr.mxu0 0.0
    %650 = vmatpush1.msra.mxu0 0.0
    %651 = vmatprep.subr.mxu0 0.0
    %652 = vmatpush1.msra.mxu0 0.0
    %653 = vmatprep.subr.mxu0 0.0
    %654 = vmatpush1.msra.mxu0 0.0
    %655 = vmatprep.subr.mxu0 0.0
    %656 = vmatpush1.msra.mxu0 0.0
    %657 = vmatprep.subr.mxu0 0.0
    %658 = vmatpush1.msra.mxu0 0.0
    %659 = vmatprep.subr.mxu0 0.0
    %660 = vmatpush1.msra.mxu0 0.0
    %661 = vmatprep.subr.mxu0 0.0
    %662 = vmatpush1.msra.mxu0 0.0
    %663 = vmatprep.subr.mxu0 0.0
    %664 = vmatpush1.msra.mxu0 0.0
    %665 = vmatprep.subr.mxu0 0.0
    %666 = vmatpush1.msra.mxu0 0.0
    %667 = vmatprep.subr.mxu0 0.0
    %668 = vmatpush1.msra.mxu0 0.0
    %669 = vmatprep.subr.mxu0 0.0
    %670 = vmatpush1.msra.mxu0 0.0
    %671 = vmatprep.subr.mxu0 0.0
    %672 = vmatpush1.msra.mxu0 0.0
    %673 = vmatprep.subr.mxu0 0.0
    %674 = vmatpush1.msra.mxu0 0.0
    %675 = vmatprep.subr.mxu0 0.0
    %676 = vmatpush1.msra.mxu0 0.0
    %677 = vmatprep.subr.mxu0 0.0
    %678 = vmatpush1.msra.mxu0 0.0
    %679 = vmatprep.subr.mxu0 0.0
    %680 = vmatpush1.msra.mxu0 0.0
    %681 = vmatprep.subr.mxu0 0.0
    %682 = vmatpush1.msra.mxu0 0.0
    %683 = vmatprep.subr.mxu0 0.0
    %684 = vmatpush1.msra.mxu0 0.0
    %685 = vmatprep.subr.mxu0 0.0
    %686 = vmatpush1.msra.mxu0 0.0
    %687 = vmatprep.subr.mxu0 0.0
    %688 = vmatpush1.msra.mxu0 0.0
    %689 = vmatprep.subr.mxu0 0.0
    %690 = vmatpush1.msra.mxu0 0.0
    %691 = vmatprep.subr.mxu0 0.0
    %692 = vmatpush1.msra.mxu0 0.0
    %693 = vmatprep.mubr.f32.mxu0 0.0
    %694 = vmatmul.mubr.f32.gmra.mrb[0].mxu0 %v234
    %v695 = vpop.f32.mrb[0].mxu0
    %v696 = vadd.f32 %v191, %v695
    %v697 = vpop.f32.mrb[0].mxu0
    %v698 = vadd.f32 %v191, %v697
    %699 = vmatprep.mubr.f32.mxu0 0.0
    %700 = vmatmul.mubr.f32.gmra.mrb[0].mxu0 %v237
    %v701 = vpop.f32.mrb[0].mxu0
    %v702 = vadd.f32 %v196, %v701
    %v703 = vpop.f32.mrb[0].mxu0
    %v704 = vadd.f32 %v196, %v703
    %705 = vmatprep.mubr.f32.mxu0 0.0
    %706 = vmatmul.mubr.f32.gmra.mrb[0].mxu0 %v240
    %v707 = vpop.f32.mrb[0].mxu0
    %v708 = vadd.f32 %v201, %v707
    %v709 = vpop.f32.mrb[0].mxu0
    %v710 = vadd.f32 %v201, %v709
    %711 = vmatprep.mubr.f32.mxu0 0.0
    %712 = vmatmul.mubr.f32.gmra.mrb[0].mxu0 %v243
    %v713 = vpop.f32.mrb[0].mxu0
    %v714 = vadd.f32 %v206, %v713
    %v715 = vpop.f32.mrb[0].mxu0
    %v716 = vadd.f32 %v206, %v715
    %717 = vdwg.mxu0
    %v718 = vadd.f32 %v696, %v607
    %v719 = vadd.f32 %v698, %v609
    %v720 = vadd.f32 %v702, %v613
    %v721 = vadd.f32 %v704, %v615
    %v722 = vadd.f32 %v708, %v619
    %v723 = vadd.f32 %v710, %v621
    %v724 = vadd.f32 %v714, %v625
    %v725 = vadd.f32 %v716, %v627
    %726 = vmatprep.subr.mxu0 %v719
    %727 = vmatpush1.msra.mxu0 %v718
    %728 = vmatprep.subr.mxu0 %v721
    %729 = vmatpush1.msra.mxu0 %v720
    %730 = vmatprep.subr.mxu0 %v723
    %731 = vmatpush1.msra.mxu0 %v722
    %732 = vmatprep.subr.mxu0 %v725
    %733 = vmatpush1.msra.mxu0 %v724
    %734 = vmatprep.subr.mxu0 0.0
    %735 = vmatpush1.msra.mxu0 0.0
    %736 = vmatprep.subr.mxu0 0.0
    %737 = vmatpush1.msra.mxu0 0.0
    %738 = vmatprep.subr.mxu0 0.0
    %739 = vmatpush1.msra.mxu0 0.0
    %740 = vmatprep.subr.mxu0 0.0
    %741 = vmatpush1.msra.mxu0 0.0
    %742 = vmatprep.subr.mxu0 0.0
    %743 = vmatpush1.msra.mxu0 0.0
    %744 = vmatprep.subr.mxu0 0.0
    %745 = vmatpush1.msra.mxu0 0.0
    %746 = vmatprep.subr.mxu0 0.0
    %747 = vmatpush1.msra.mxu0 0.0
    %748 = vmatprep.subr.mxu0 0.0
    %749 = vmatpush1.msra.mxu0 0.0
    %750 = vmatprep.subr.mxu0 0.0
    %751 = vmatpush1.msra.mxu0 0.0
    %752 = vmatprep.subr.mxu0 0.0
    %753 = vmatpush1.msra.mxu0 0.0
    %754 = vmatprep.subr.mxu0 0.0
    %755 = vmatpush1.msra.mxu0 0.0
    %756 = vmatprep.subr.mxu0 0.0
    %757 = vmatpush1.msra.mxu0 0.0
    %758 = vmatprep.subr.mxu0 0.0
    %759 = vmatpush1.msra.mxu0 0.0
    %760 = vmatprep.subr.mxu0 0.0
    %761 = vmatpush1.msra.mxu0 0.0
    %762 = vmatprep.subr.mxu0 0.0
    %763 = vmatpush1.msra.mxu0 0.0
    %764 = vmatprep.subr.mxu0 0.0
    %765 = vmatpush1.msra.mxu0 0.0
    %766 = vmatprep.subr.mxu0 0.0
    %767 = vmatpush1.msra.mxu0 0.0
    %768 = vmatprep.subr.mxu0 0.0
    %769 = vmatpush1.msra.mxu0 0.0
    %770 = vmatprep.subr.mxu0 0.0
    %771 = vmatpush1.msra.mxu0 0.0
    %772 = vmatprep.subr.mxu0 0.0
    %773 = vmatpush1.msra.mxu0 0.0
    %774 = vmatprep.subr.mxu0 0.0
    %775 = vmatpush1.msra.mxu0 0.0
    %776 = vmatprep.subr.mxu0 0.0
    %777 = vmatpush1.msra.mxu0 0.0
    %778 = vmatprep.subr.mxu0 0.0
    %779 = vmatpush1.msra.mxu0 0.0
    %780 = vmatprep.subr.mxu0 0.0
    %781 = vmatpush1.msra.mxu0 0.0
    %782 = vmatprep.subr.mxu0 0.0
    %783 = vmatpush1.msra.mxu0 0.0
    %784 = vmatprep.subr.mxu0 0.0
    %785 = vmatpush1.msra.mxu0 0.0
    %786 = vmatprep.subr.mxu0 0.0
    %787 = vmatpush1.msra.mxu0 0.0
    %788 = vmatprep.subr.mxu0 0.0
    %789 = vmatpush1.msra.mxu0 0.0
    %790 = vmatprep.mubr.f32.mxu0 0.0
    %791 = vmatmul.mubr.f32.gmra.mrb[0].mxu0 %v343
    %v792 = vpop.f32.mrb[0].mxu0
    %v793 = vadd.f32 %v215, %v792
    %v794 = vpop.f32.mrb[0].mxu0
    %v795 = vadd.f32 %v215, %v794
    %796 = vmatprep.mubr.f32.mxu0 0.0
    %797 = vmatmul.mubr.f32.gmra.mrb[0].mxu0 %v346
    %v798 = vpop.f32.mrb[0].mxu0
    %v799 = vadd.f32 %v220, %v798
    %v800 = vpop.f32.mrb[0].mxu0
    %v801 = vadd.f32 %v220, %v800
    %802 = vmatprep.mubr.f32.mxu0 0.0
    %803 = vmatmul.mubr.f32.gmra.mrb[0].mxu0 %v349
    %v804 = vpop.f32.mrb[0].mxu0
    %v805 = vadd.f32 %v225, %v804
    %v806 = vpop.f32.mrb[0].mxu0
    %v807 = vadd.f32 %v225, %v806
    %808 = vmatprep.mubr.f32.mxu0 0.0
    %809 = vmatmul.mubr.f32.gmra.mrb[0].mxu0 %v352
    %v810 = vpop.f32.mrb[0].mxu0
    %v811 = vadd.f32 %v230, %v810
    %v812 = vpop.f32.mrb[0].mxu0
    %v813 = vadd.f32 %v230, %v812
    %814 = vdwg.mxu0
    %v815 = vmax.f32 %v793, 0.0
    %v816 = vmax.f32 %v795, 0.0
    %v817 = vmax.f32 %v799, 0.0
    %v818 = vmax.f32 %v801, 0.0
    %v819 = vmax.f32 %v805, 0.0
    %v820 = vmax.f32 %v807, 0.0
    %v821 = vmax.f32 %v811, 0.0
    %v822 = vmax.f32 %v813, 0.0
    %v823 = vld [vmem:[%s7] sm:$0x7]
    %v824 = vld [vmem:[%s8] sm:$0x7]
    %826 = vset.pattern.permute.xlu0 0
    %827 = vperm.xlu0 %826, %v824
    %v828 = vpop.permute.xlu0 %827
    %v831 = vsel %vm232, %v823, 0
    %833 = vmatprep.subr.mxu0 %v816
    %834 = vmatpush1.msra.mxu0 %v815
    %835 = vmatprep.subr.mxu0 %v818
    %836 = vmatpush1.msra.mxu0 %v817
    %837 = vmatprep.subr.mxu0 %v820
    %838 = vmatpush1.msra.mxu0 %v819
    %839 = vmatprep.subr.mxu0 %v822
    %840 = vmatpush1.msra.mxu0 %v821
    %841 = vmatprep.subr.mxu0 0.0
    %842 = vmatpush1.msra.mxu0 0.0
    %843 = vmatprep.subr.mxu0 0.0
    %844 = vmatpush1.msra.mxu0 0.0
    %845 = vmatprep.subr.mxu0 0.0
    %846 = vmatpush1.msra.mxu0 0.0
    %847 = vmatprep.subr.mxu0 0.0
    %848 = vmatpush1.msra.mxu0 0.0
    %849 = vmatprep.subr.mxu0 0.0
    %850 = vmatpush1.msra.mxu0 0.0
    %851 = vmatprep.subr.mxu0 0.0
    %852 = vmatpush1.msra.mxu0 0.0
    %853 = vmatprep.subr.mxu0 0.0
    %854 = vmatpush1.msra.mxu0 0.0
    %855 = vmatprep.subr.mxu0 0.0
    %856 = vmatpush1.msra.mxu0 0.0
    %857 = vmatprep.subr.mxu0 0.0
    %858 = vmatpush1.msra.mxu0 0.0
    %859 = vmatprep.subr.mxu0 0.0
    %860 = vmatpush1.msra.mxu0 0.0
    %861 = vmatprep.subr.mxu0 0.0
    %862 = vmatpush1.msra.mxu0 0.0
    %863 = vmatprep.subr.mxu0 0.0
    %864 = vmatpush1.msra.mxu0 0.0
    %865 = vmatprep.subr.mxu0 0.0
    %866 = vmatpush1.msra.mxu0 0.0
    %867 = vmatprep.subr.mxu0 0.0
    %868 = vmatpush1.msra.mxu0 0.0
    %869 = vmatprep.subr.mxu0 0.0
    %870 = vmatpush1.msra.mxu0 0.0
    %871 = vmatprep.subr.mxu0 0.0
    %872 = vmatpush1.msra.mxu0 0.0
    %873 = vmatprep.subr.mxu0 0.0
    %874 = vmatpush1.msra.mxu0 0.0
    %875 = vmatprep.subr.mxu0 0.0
    %876 = vmatpush1.msra.mxu0 0.0
    %877 = vmatprep.subr.mxu0 0.0
    %878 = vmatpush1.msra.mxu0 0.0
    %879 = vmatprep.subr.mxu0 0.0
    %880 = vmatpush1.msra.mxu0 0.0
    %881 = vmatprep.subr.mxu0 0.0
    %882 = vmatpush1.msra.mxu0 0.0
    %883 = vmatprep.subr.mxu0 0.0
    %884 = vmatpush1.msra.mxu0 0.0
    %885 = vmatprep.subr.mxu0 0.0
    %886 = vmatpush1.msra.mxu0 0.0
    %887 = vmatprep.subr.mxu0 0.0
    %888 = vmatpush1.msra.mxu0 0.0
    %889 = vmatprep.subr.mxu0 0.0
    %890 = vmatpush1.msra.mxu0 0.0
    %891 = vmatprep.subr.mxu0 0.0
    %892 = vmatpush1.msra.mxu0 0.0
    %893 = vmatprep.subr.mxu0 0.0
    %894 = vmatpush1.msra.mxu0 0.0
    %895 = vmatprep.subr.mxu0 0.0
    %896 = vmatpush1.msra.mxu0 0.0
    %897 = vmatprep.mubr.f32.mxu0 0.0
    %898 = vmatmul.mubr.f32.gmra.mrb[0].mxu0 %v831
    %v899 = vpop.f32.mrb[0].mxu0
    %v900 = vadd.f32 %v828, %v899
    %v901 = vpop.f32.mrb[0].mxu0
    %v902 = vadd.f32 %v828, %v901
    %903 = vdwg.mxu0
    %v906 = vcombine.low %v900, %v902
    %908 = vst [vmem:[#allocation2] sm:$0x77] %v906
    // Predicated region
    $region38: #{tpu_custom_call.1} parent=1 // pred_check
      _
    $region39: #{tpu_custom_call.1} parent=1 // pred_check_branch
      %910 = sbr.rel (0) target = $region41
    $region40: #{tpu_custom_call.1} parent=1 // pred_region
      %s912 = ssub.s32 128, 128
      %913 = vsyncadd [#allocation3], %s912
      %s915 = sshll.u32 [#allocation2], 4
      %s916 = int_to_ptr.vmem [resolvable:$true] %s915
      %918 = dma.vmem_to_hbm [thread:$0]  %s916, 128, %s9, [#allocation3]
    $region41: #{tpu_custom_call.1} parent=1 // pred_fallthru
      _
    // Predicated region
    $region42: #{tpu_custom_call.1} parent=1 // pred_check
      _
    $region43: #{tpu_custom_call.1} parent=1 // pred_check_branch
      %920 = sbr.rel (0) target = $region45
    $region44: #{tpu_custom_call.1} parent=1 // pred_region
      %921 = dma.done [#allocation3], 128
    $region45: #{tpu_custom_call.1} parent=1 // pred_fallthru
      _
    %922 = vsyncpa [#allocation3], 1

</llo_original>
